<compile_context>
chip_gen: v5e
topology: v5e:2x2
jax: 0.10.0
libtpu: 0.0.40
codegen_flags: <defaults>
</compile_context>

<pallas_src>
import jax
import jax.numpy as jnp
from jax.experimental import pallas as pl
from jax.experimental.pallas import tpu as pltpu


# ----------------------------- kernels ------------------------------------- #

def _att_kernel_vpu(out_ref, h_ref, w_ref):
    """T small (decoder step): VPU contraction over H, S lane-dense softmax.

    out_ref: (S, bb, H)  encoder outputs, native layout
    h_ref:   (T, bb, H)  decoder hidden(s), native layout
    w_ref:   (T, bb, S)  attention weights, S on the lane axis
    """
    o = out_ref[...].astype(jnp.float32)               # upcast once; no-op for f32
    n_t = h_ref.shape[0]
    for t in range(n_t):                               # static unroll; T < 8 here
        ht = h_ref[t].astype(jnp.float32)              # (bb, H)
        # f32 accumulation over H on the VPU (lane reduction); matches torch bmm.
        s = jnp.sum(o * ht[None, :, :], axis=-1)       # (S, bb)
        st = jnp.tanh(s.T)                             # (bb, S): S on the lane axis
        # tanh bounds logits to [-1, 1] => exp in [1/e, e]; safe to skip max-sub.
        e = jnp.exp(st)
        denom = jnp.sum(e, axis=-1, keepdims=True)     # (bb, 1) lane reduction
        w_ref[t] = (e / denom).astype(w_ref.dtype)     # exact normalization


def _att_kernel_mxu(out_ref, h_ref, w_ref):
    """T >= 8: batched MXU matmul (S,H)x(H,T) per batch row, f32 accumulation.

    out_ref: (S, bb, H)
    h_ref:   (T, bb, H)
    w_ref:   (bb, T, S)  S on the lane axis
    """
    scores = jax.lax.dot_general(
        h_ref[...], out_ref[...],
        dimension_numbers=(((2,), (2,)), ((1,), (1,))),   # contract H, batch over bb
        preferred_element_type=jnp.float32,
    )                                                     # (bb, T, S)
    scores = jnp.tanh(scores)
    e = jnp.exp(scores)
    denom = jnp.sum(e, axis=-1, keepdims=True)            # (bb, T, 1) lane reduction
    w_ref[...] = (e / denom).astype(w_ref.dtype)


# ----------------------------- tiling policy -------------------------------- #

def _pad_up(n, m):
    return ((n + m - 1) // m) * m


def _block_vmem_bytes(bb, S, T, H, itemsize, use_mxu):
    """Conservative per-grid-step VMEM estimate including (8,128) tile padding."""
    bbp = _pad_up(max(bb, 1), 8)       # sublane padding of the batch block
    hp = _pad_up(H, 128)               # lane padding of the hidden dim
    sp = _pad_up(S, 128)               # lane padding of the score dim
    tp = _pad_up(T, 8)
    in_out = S * bbp * hp * itemsize                       # (S, bb, H) encoder block
    in_h = T * bbp * hp * itemsize                         # (T, bb, H) decoder block
    out_w = (bbp * tp * sp if use_mxu else T * bbp * sp) * itemsize
    dbuf = 2 * (in_out + in_h + out_w)                     # default double buffering
    # f32 working set in the body (upcast copies + score/exp intermediates).
    work = 4 * (S * bbp * hp + T * bbp * hp + 2 * bbp * tp * sp)
    return dbuf + work


def _choose_bb(B, S, T, H, itemsize, budget, use_mxu):
    """Pick the batch-block size: fits the padded-VMEM budget, keeps a legal
    (multiple-of-8 or full-B) block, and leaves a multi-step grid when B allows."""
    bb = B if B <= 8 else _pad_up(B, 8)
    while bb > 1 and _block_vmem_bytes(bb, S, T, H, itemsize, use_mxu) > budget:
        bb = bb - 8 if bb > 8 else bb // 2
    bb = min(bb, B)
    if bb < B and bb % 8 != 0:
        # Budget forced bb below 8 while B > 8: 8 is the smallest legal partial
        # block; the caller widens vmem_limit_bytes to cover it.
        # TODO(synk): for pathological S*H, chunk the softmax over S (online /
        # flash-style normalization) instead of inflating the VMEM limit.
        bb = 8
    # Guarantee >= 2 (ideally 4) grid steps when the batch is large enough: shards
    # the batch axis across v7x's 2 TensorCores and overlaps compute/writeback with
    # the next block's DMA.  Keep each encoder block >= ~1 MiB so the ~0.35 us/step
    # overhead stays negligible.
    if B >= 16 and bb >= 16:
        hp = _pad_up(H, 128)
        one_mib_rows = _pad_up(max(1, pl.cdiv(1 << 20, S * hp * itemsize)), 8)
        target_steps = 4 if B >= 4 * max(8, one_mib_rows) else 2
        cap = max(8, one_mib_rows, _pad_up(pl.cdiv(B, target_steps), 8))
        bb = min(bb, cap)
    return max(1, min(bb, B))


# ----------------------------- wrapper -------------------------------------- #

def att_forward(h_, output, *, block_budget_bytes=None):
    """h_: (T, B, H), output: (S, B, H)  ->  w: (B, S, T) (softmax over S)."""
    T, B, H = h_.shape
    S, B2, H2 = output.shape
    assert (B2, H2) == (B, H)
    itemsize = jnp.dtype(output.dtype).itemsize

    # Per-generation VMEM budgets (v5e/v6e: 128 MiB physical, v7x: 64 MiB per TC).
    try:
        vmem_physical = int(pltpu.get_tpu_info().vmem_capacity_bytes)
    except Exception:
        vmem_physical = 64 * 1024 * 1024          # conservative (v7x per-TensorCore)
    vmem_cap = (3 * vmem_physical) // 4           # scoped ceiling, Mosaic headroom
    if block_budget_bytes is None:
        block_budget_bytes = vmem_physical // 4   # ~16 MiB v7x, ~32 MiB v5e/v6e

    use_mxu = T >= 8
    bb = _choose_bb(B, S, T, H, itemsize, block_budget_bytes, use_mxu)

    need = _block_vmem_bytes(bb, S, T, H, itemsize, use_mxu)
    vmem_limit = int(min(vmem_cap, max(32 * 1024 * 1024, need + (4 << 20))))

    cost = pl.CostEstimate(
        flops=2 * S * B * H * T,
        transcendentals=2 * B * S * T,            # tanh + exp per score
        bytes_accessed=(S * B * H + T * B * H + T * B * S) * itemsize,
    )

    grid = (pl.cdiv(B, bb),)
    in_specs = [
        pl.BlockSpec((S, bb, H), lambda b: (0, b, 0)),   # output: native (S, B, H)
        pl.BlockSpec((T, bb, H), lambda b: (0, b, 0)),   # h_:     native (T, B, H)
    ]
    params = pltpu.CompilerParams(
        dimension_semantics=("parallel",),               # batch axis: megacore shard
        vmem_limit_bytes=vmem_limit,
    )

    if use_mxu:
        res = pl.pallas_call(
            _att_kernel_mxu,
            out_shape=jax.ShapeDtypeStruct((B, T, S), output.dtype),
            grid=grid,
            in_specs=in_specs,
            out_specs=pl.BlockSpec((bb, T, S), lambda b: (b, 0, 0)),
            compiler_params=params,
            cost_estimate=cost,
        )(output, h_)
        # (B, T, S) -> (B, S, T): tiny tensor; negligible vs the (S*B*H) input.
        return jnp.transpose(res, (0, 2, 1))
    else:
        res = pl.pallas_call(
            _att_kernel_vpu,
            out_shape=jax.ShapeDtypeStruct((T, B, S), output.dtype),
            grid=grid,
            in_specs=in_specs,
            out_specs=pl.BlockSpec((T, bb, S), lambda b: (0, b, 0)),
            compiler_params=params,
            cost_estimate=cost,
        )(output, h_)
        # (T, B, S) -> (B, S, T)
        return jnp.transpose(res, (1, 2, 0))


# ----------------------------- reference & test ----------------------------- #

def _reference(h_, output):
    # Pure-JAX reference mirroring the PyTorch code exactly.
    out = jnp.einsum(
        "bsh,bht->bst",
        jnp.transpose(output, (1, 0, 2)),
        jnp.transpose(jnp.transpose(h_, (1, 0, 2)), (0, 2, 1)),
    )
    out = jnp.tanh(out)
    return jax.nn.softmax(out, axis=1)


if __name__ == "__main__":
    key = jax.random.PRNGKey(0)
    k1, k2, k3, k4 = jax.random.split(key, 4)

    H = 32   # hidden_size
    B = 2    # batch
    S = 8    # encoder sequence length

    # Case 1: T = 1 (the typical single-step decoder hidden) -> VPU path.
    T1 = 1
    h1 = jax.random.normal(k1, (T1, B, H), dtype=jnp.float32)
    out1 = jax.random.normal(k2, (S, B, H), dtype=jnp.float32)
    w1 = jax.block_until_ready(att_forward(h1, out1))
    w1_ref = _reference(h1, out1)
    assert w1.shape == (B, S, T1), w1.shape
    assert jnp.allclose(w1, w1_ref, atol=1e-4, rtol=1e-4), "T=1 mismatch vs reference"

    # Case 2: T = 8 (multi-step hidden) -> MXU path.
    T2 = 8
    h2 = jax.random.normal(k3, (T2, B, H), dtype=jnp.float32)
    out2 = jax.random.normal(k4, (S, B, H), dtype=jnp.float32)
    w2 = jax.block_until_ready(att_forward(h2, out2))
    w2_ref = _reference(h2, out2)
    assert w2.shape == (B, S, T2), w2.shape
    assert jnp.allclose(w2, w2_ref, atol=1e-4, rtol=1e-4), "T=8 mismatch vs reference"

    print("KERNEL_OK")
</pallas_src>

<mosaic_0001>
module attributes {stable_mosaic.version = 11 : i64} {
  func.func @_att_kernel_vpu(%arg0: i32, %arg1: memref<8x2x32xf32, #tpu.memory_space<vmem>>, %arg2: memref<1x2x32xf32, #tpu.memory_space<vmem>>, %arg3: memref<1x2x8xf32, #tpu.memory_space<vmem>>) attributes {dimension_semantics = [#tpu.dimension_semantics<parallel>], iteration_bounds = array<i64: 1>, scalar_prefetch = 0 : i64, scratch_operands = 0 : i64, tpu.core_type = #tpu.core_type<tc>, window_params = [{transform_indices = @transform_0, window_bounds = array<i64: 8, 2, 32>}, {transform_indices = @transform_1, window_bounds = array<i64: 1, 2, 32>}, {transform_indices = @transform_2, window_bounds = array<i64: 1, 2, 8>}]} {
    %c0 = arith.constant 0 : index
    %c0_0 = arith.constant 0 : index
    %c0_1 = arith.constant 0 : index
    %0 = vector.load %arg1[%c0, %c0_0, %c0_1] : memref<8x2x32xf32, #tpu.memory_space<vmem>>, vector<8x2x32xf32>
    %c0_2 = arith.constant 0 : index
    %c0_3 = arith.constant 0 : index
    %c0_4 = arith.constant 0 : index
    %1 = vector.load %arg2[%c0_2, %c0_3, %c0_4] : memref<1x2x32xf32, #tpu.memory_space<vmem>>, vector<1x2x32xf32>
    %2 = vector.shape_cast %1 : vector<1x2x32xf32> to vector<2x32xf32>
    %3 = vector.shape_cast %2 : vector<2x32xf32> to vector<1x2x32xf32>
    %4 = vector.broadcast %3 : vector<1x2x32xf32> to vector<8x2x32xf32>
    %5 = arith.mulf %0, %4 : vector<8x2x32xf32>
    %cst = arith.constant dense<0.000000e+00> : vector<8x2xf32>
    %6 = vector.multi_reduction <add>, %5, %cst [2] : vector<8x2x32xf32> to vector<8x2xf32>
    %7 = tpu.transpose %6, [1, 0] : vector<8x2xf32> -> vector<2x8xf32>
    %8 = math.tanh %7 : vector<2x8xf32>
    %9 = math.exp %8 : vector<2x8xf32>
    %cst_5 = arith.constant dense<0.000000e+00> : vector<2xf32>
    %10 = vector.multi_reduction <add>, %9, %cst_5 [1] : vector<2x8xf32> to vector<2xf32>
    %11 = vector.shape_cast %10 : vector<2xf32> to vector<2x1xf32>
    %12 = vector.broadcast %11 : vector<2x1xf32> to vector<2x8xf32>
    %13 = arith.divf %9, %12 : vector<2x8xf32>
    %c0_6 = arith.constant 0 : index
    %c0_7 = arith.constant 0 : index
    %c0_8 = arith.constant 0 : index
    %14 = vector.load %arg3[%c0_6, %c0_7, %c0_8] : memref<1x2x8xf32, #tpu.memory_space<vmem>>, vector<1x2x8xf32>
    %15 = vector.shape_cast %14 : vector<1x2x8xf32> to vector<2x8xf32>
    %16 = vector.shape_cast %13 : vector<2x8xf32> to vector<1x2x8xf32>
    tpu.vector_store %arg3[%c0_6, %c0_7, %c0_8], %16 {strides = array<i32>} : memref<1x2x8xf32, #tpu.memory_space<vmem>>, vector<1x2x8xf32>,
    return
  }
  func.func @transform_0(%arg0: i32) -> (i32, i32, i32) {
    %c0_i32 = arith.constant 0 : i32
    %c0_i32_0 = arith.constant 0 : i32
    %c0_i32_1 = arith.constant 0 : i32
    return %c0_i32, %arg0, %c0_i32_0 : i32, i32, i32
  }
  func.func @transform_1(%arg0: i32) -> (i32, i32, i32) {
    %c0_i32 = arith.constant 0 : i32
    %c0_i32_0 = arith.constant 0 : i32
    %c0_i32_1 = arith.constant 0 : i32
    return %c0_i32, %arg0, %c0_i32_0 : i32, i32, i32
  }
  func.func @transform_2(%arg0: i32) -> (i32, i32, i32) {
    %c0_i32 = arith.constant 0 : i32
    %c0_i32_0 = arith.constant 0 : i32
    %c0_i32_1 = arith.constant 0 : i32
    return %c0_i32, %arg0, %c0_i32_0 : i32, i32, i32
  }
}

</mosaic_0001>

<llo_original>
// kernel: tpu_custom_call.1
$region0: #{tpu_custom_call.1}
  #allocation0 [shape = 'u32[]', space=smem, size = 0x4, offset = 0x4, fixed_abs, tag = 'smem constant byte address 0x4 - core index']
  #allocation1 [shape = 'u32[72,128]{1,0:T(1,128)}', space=vmem, size = 0x9000, scoped, tag = 'internal scratch']
  %s0 = inlined_call_operand.hbm [shape: f32[8,2,32], index: 0, kind: input, shape index: {}]
  %s1 = inlined_call_operand.hbm [shape: f32[1,2,32], index: 1, kind: input, shape index: {}]
  %s2 = inlined_call_operand.hbm [shape: f32[1,2,8], index: 2, kind: output, shape index: {}]
  %s3 = sld [smem:[#allocation0]]
  $region26: #{tpu_custom_call.1} parent=0
    _
  %s5 = ssub.s32 1, %s3
  %s6 = scalar_select 0, %s5, %s3
  $region1: #{tpu_custom_call.1} parent=0
    #allocation2 [shape = 'u8[8192]{0}', space=vmem, size = 0x2000, scoped, tag = 'input window, operand 0, single buffered']
    #allocation3 [shape = 's32[1]{0}', space=sflag, size = 0x4, scoped, tag = 'scoped memory for tpu_custom_call.1']
    #allocation4 [shape = 's32[1]{0}', space=sflag, size = 0x4, scoped, tag = 'scoped memory for tpu_custom_call.1']
    #allocation5 [shape = 'u8[1024]{0}', space=vmem, size = 0x400, scoped, tag = 'input window, operand 1, single buffered']
    #allocation6 [shape = 's32[1]{0}', space=sflag, size = 0x4, scoped, tag = 'scoped memory for tpu_custom_call.1']
    #allocation7 [shape = 'u8[1024]{0}', space=vmem, size = 0x400, scoped, tag = 'output window, operand 0, single buffered']
    %7 = vsyncpa [#allocation3], 0
    %8 = vsyncpa [#allocation6], 0
    %9 = vsyncpa [#allocation4], 0
    // Predicated region
    $region2: #{tpu_custom_call.1} parent=1 // pred_check
      _
    $region3: #{tpu_custom_call.1} parent=1 // pred_check_branch
      %11 = sbr.rel (0) target = $region5
    $region4: #{tpu_custom_call.1} parent=1 // pred_region
      %13 = vsyncadd [#allocation3], 0
      %s14 = sshll.u32 %s0, 4
      %s15 = int_to_ptr.hbm [resolvable:$true] %s14
      %s16 = sshll.u32 [#allocation2], 4
      %s17 = int_to_ptr.vmem [resolvable:$true] %s16
      %22 = dma.hbm_to_vmem [thread:$0]  %s15, 256, %s17, [#allocation3], 32, 32, 2
    $region5: #{tpu_custom_call.1} parent=1 // pred_fallthru
      _
    // Predicated region
    $region6: #{tpu_custom_call.1} parent=1 // pred_check
      _
    $region7: #{tpu_custom_call.1} parent=1 // pred_check_branch
      %24 = sbr.rel (0) target = $region9
    $region8: #{tpu_custom_call.1} parent=1 // pred_region
      %26 = vsyncadd [#allocation6], 0
      %s28 = sshll.u32 %s1, 4
      %s29 = int_to_ptr.hbm [resolvable:$true] %s28
      %s30 = sshll.u32 [#allocation5], 4
      %s31 = int_to_ptr.vmem [resolvable:$true] %s30
      %33 = dma.hbm_to_vmem [thread:$0]  %s29, 32, %s31, [#allocation6]
    $region9: #{tpu_custom_call.1} parent=1 // pred_fallthru
      _
    // Predicated region
    $region10: #{tpu_custom_call.1} parent=1 // pred_check
      _
    $region11: #{tpu_custom_call.1} parent=1 // pred_check_branch
      %35 = sbr.rel (0) target = $region13
    $region12: #{tpu_custom_call.1} parent=1 // pred_region
      %37 = dma.done [#allocation3], 256
    $region13: #{tpu_custom_call.1} parent=1 // pred_fallthru
      _
    // Predicated region
    $region14: #{tpu_custom_call.1} parent=1 // pred_check
      _
    $region15: #{tpu_custom_call.1} parent=1 // pred_check_branch
      %39 = sbr.rel (0) target = $region17
    $region16: #{tpu_custom_call.1} parent=1 // pred_region
      %41 = dma.done [#allocation6], 32
    $region17: #{tpu_custom_call.1} parent=1 // pred_fallthru
      _
    %v42 = vld [vmem:[#allocation2] sm:$0x3]
    %v43 = vld [vmem:[#allocation2 + $0x2] sm:$0x3]
    %v44 = vld [vmem:[#allocation2 + $0x4] sm:$0x3]
    %v45 = vld [vmem:[#allocation2 + $0x6] sm:$0x3]
    %v46 = vld [vmem:[#allocation2 + $0x8] sm:$0x3]
    %v47 = vld [vmem:[#allocation2 + $0xa] sm:$0x3]
    %v48 = vld [vmem:[#allocation2 + $0xc] sm:$0x3]
    %v49 = vld [vmem:[#allocation2 + $0xe] sm:$0x3]
    %v50 = vld [vmem:[#allocation5] sm:$0x3]
    %v51 = vmul.f32 %v42, %v50
    %v52 = vmul.f32 %v43, %v50
    %v53 = vmul.f32 %v44, %v50
    %v54 = vmul.f32 %v45, %v50
    %v55 = vmul.f32 %v46, %v50
    %v56 = vmul.f32 %v47, %v50
    %v57 = vmul.f32 %v48, %v50
    %v58 = vmul.f32 %v49, %v50
    %vm59 = vcmask 254976
    %v60 = vsel %vm59, %v51, 0.0
    %61 = vadd.xlane.f32.xlu0 %v60
    %v62 = vpop.xlane.xlu0 %61
    %v63 = vsel %vm59, %v52, 0.0
    %64 = vadd.xlane.f32.xlu0 %v63
    %v65 = vpop.xlane.xlu0 %64
    %v66 = vsel %vm59, %v53, 0.0
    %67 = vadd.xlane.f32.xlu0 %v66
    %v68 = vpop.xlane.xlu0 %67
    %v69 = vsel %vm59, %v54, 0.0
    %70 = vadd.xlane.f32.xlu0 %v69
    %v71 = vpop.xlane.xlu0 %70
    %v72 = vsel %vm59, %v55, 0.0
    %73 = vadd.xlane.f32.xlu0 %v72
    %v74 = vpop.xlane.xlu0 %73
    %v75 = vsel %vm59, %v56, 0.0
    %76 = vadd.xlane.f32.xlu0 %v75
    %v77 = vpop.xlane.xlu0 %76
    %v78 = vsel %vm59, %v57, 0.0
    %79 = vadd.xlane.f32.xlu0 %v78
    %v80 = vpop.xlane.xlu0 %79
    %v81 = vsel %vm59, %v58, 0.0
    %82 = vadd.xlane.f32.xlu0 %v81
    %v83 = vpop.xlane.xlu0 %82
    %v92 = vlaneseq
    %v93 = vand.u32 %v92, 127
    %v94 = vperm.slane %v62, %v93
    %v95 = vperm.slane %v65, %v93
    %v96 = vperm.slane %v68, %v93
    %v97 = vperm.slane %v71, %v93
    %v98 = vperm.slane %v74, %v93
    %v99 = vperm.slane %v77, %v93
    %v100 = vperm.slane %v80, %v93
    %v101 = vperm.slane %v83, %v93
    %vm102 = vcmask 1041409
    %v103 = vsel %vm102, %v95, %v94
    %vm104 = vcmask 1042434
    %v105 = vsel %vm104, %v96, %v103
    %vm106 = vcmask 1043459
    %v107 = vsel %vm106, %v97, %v105
    %vm108 = vcmask 1044484
    %v109 = vsel %vm108, %v98, %v107
    %vm110 = vcmask 1045509
    %v111 = vsel %vm110, %v99, %v109
    %vm112 = vcmask 1046534
    %v113 = vsel %vm112, %v100, %v111
    %vm114 = vcmask 1047559
    %v115 = vsel %vm114, %v101, %v113
    %117 = vxpose.xlu0.b32.start [1/16] %v115, 128
    %118 = vxpose.xlu0.b32.cont [2/16] 0.0, 128
    %119 = vxpose.xlu0.b32.cont [3/16] 0.0, 128
    %120 = vxpose.xlu0.b32.cont [4/16] 0.0, 128
    %121 = vxpose.xlu0.b32.cont [5/16] 0.0, 128
    %122 = vxpose.xlu0.b32.cont [6/16] 0.0, 128
    %123 = vxpose.xlu0.b32.cont [7/16] 0.0, 128
    %124 = vxpose.xlu0.b32.cont [8/16] 0.0, 128
    %125 = vxpose.xlu0.b32.cont [9/16] 0.0, 128
    %126 = vxpose.xlu0.b32.cont [10/16] 0.0, 128
    %127 = vxpose.xlu0.b32.cont [11/16] 0.0, 128
    %128 = vxpose.xlu0.b32.cont [12/16] 0.0, 128
    %129 = vxpose.xlu0.b32.cont [13/16] 0.0, 128
    %130 = vxpose.xlu0.b32.cont [14/16] 0.0, 128
    %131 = vxpose.xlu0.b32.cont [15/16] 0.0, 128
    %132 = vxpose.xlu0.b32.end [16/16] 0.0, 128
    %v133 = vpop.trf.xlu0
    %v134 = vpop.trf.xlu0
    %v135 = vpop.trf.xlu0
    %v136 = vpop.trf.xlu0
    %v137 = vpop.trf.xlu0
    %v138 = vpop.trf.xlu0
    %v139 = vpop.trf.xlu0
    %v140 = vpop.trf.xlu0
    %v141 = vpop.trf.xlu0
    %v142 = vpop.trf.xlu0
    %v143 = vpop.trf.xlu0
    %v144 = vpop.trf.xlu0
    %v145 = vpop.trf.xlu0
    %v146 = vpop.trf.xlu0
    %v147 = vpop.trf.xlu0
    %v148 = vpop.trf.xlu0
    %v149 = vtanh.pop %v133
    %v150 = vmul.f32 %v149, 1.442695
    %v151 = vpow.pop %v150
    %vm152 = vcmask 58368
    %v153 = vsel %vm152, %v151, 0.0
    %154 = vadd.xlane.f32.xlu0 %v153
    %v155 = vpop.xlane.xlu0 %154
    %v156 = vrcp.pop %v155
    %v157 = vmul.f32 %v155, %v156
    %v158 = vsub.f32 1.0, %v157
    %v159 = vmul.f32 %v156, %v158
    %v160 = vadd.f32 %v156, %v159
    %vm161 = vweird.f32 %v155
    %vm162 = vweird.f32 %v156
    %vm163 = vmor %vm161, %vm162
    %v164 = vsel %vm163, %v156, %v160
    %v165 = vand.u32 2147483647, %v155
    %vm166 = vcmp.eq.f32.partialorder %v165, 8.507059e+37
    %v167 = vand.u32 %v155, 2147483648
    %v168 = vor.u32 1.1754944e-38, %v167
    %v169 = vsel %vm166, %v168, %v164
    %v170 = vmul.f32 %v151, %v169
    %171 = vst.msk [vmem:[#allocation7] sm:$0x3] %vm152, %v170
    // Predicated region
    $region18: #{tpu_custom_call.1} parent=1 // pred_check
      _
    $region19: #{tpu_custom_call.1} parent=1 // pred_check_branch
      %173 = sbr.rel (0) target = $region21
    $region20: #{tpu_custom_call.1} parent=1 // pred_region
      %175 = vsyncadd [#allocation4], 0
      %s177 = sshll.u32 [#allocation7], 4
      %s178 = int_to_ptr.vmem [resolvable:$true] %s177
      %s179 = sshll.u32 %s2, 4
      %s180 = int_to_ptr.hbm [resolvable:$true] %s179
      %182 = dma.vmem_to_hbm [thread:$0]  %s178, 32, %s180, [#allocation4]
    $region21: #{tpu_custom_call.1} parent=1 // pred_fallthru
      _
    // Predicated region
    $region22: #{tpu_custom_call.1} parent=1 // pred_check
      _
    $region23: #{tpu_custom_call.1} parent=1 // pred_check_branch
      %184 = sbr.rel (0) target = $region25
    $region24: #{tpu_custom_call.1} parent=1 // pred_region
      %186 = dma.done [#allocation4], 32
    $region25: #{tpu_custom_call.1} parent=1 // pred_fallthru
      _
    %187 = vsyncpa [#allocation3], 1
    %188 = vsyncpa [#allocation6], 1
    %189 = vsyncpa [#allocation4], 1

</llo_original>
